<compile_context>
chip_gen: v7x
topology: tpu7x:2x2x1
jax: 0.10.0
libtpu: 0.0.40
codegen_flags: <defaults>
</compile_context>

<pallas_src>
import numpy as np
import jax
import jax.numpy as jnp
from jax.experimental import pallas as pl
from jax.experimental.pallas import tpu as pltpu

# Shapes dictated by the PyTorch module (fc1 expects 5 * 6 * 3 features).
H_IN, W_IN = 6, 10
K1, C1 = 3, 5        # conv1: 1 -> 5,  kernel (1, 3)
K2, C2 = 3, 10       # conv2: 5 -> 10, kernel (1, 3)
K3, C3 = 2, 5        # conv3: 10 -> 5, kernel (1, 2)
W1 = W_IN - K1 + 1   # 8
P1 = W1 - 1          # 7   (maxpool k=(1,2), stride 1)
W2 = P1 - K2 + 1     # 5
P2 = W2 - 1          # 4
W3 = P2 - K3 + 1     # 3
N_FEAT = H_IN * W3 * C3   # 90
N_CLS = 5


# ----------------------------- kernel ----------------------------------------


def fused_cnn_kernel(x_ref, t1_ref, b1_ref, t2_ref, b2_ref, t3_ref, b3_ref,
                     wf_ref, bf_ref, wo_ref, bo_ref, o_ref):
    x = x_ref[0]                                    # [bb, 60], lanes = (h, w) flatten

    def mm_relu(v, t_ref, b_ref):                   # conv / fc as one MXU matmul
        return jnp.maximum(
            jnp.dot(v, t_ref[...], preferred_element_type=jnp.float32)
            + b_ref[...], 0.0)

    def pool(v, c):                                 # MaxPool2d((1,2), stride 1): lane shift by C
        return jnp.maximum(v[:, :-c], v[:, c:])

    y = pool(mm_relu(x, t1_ref, b1_ref), C1)        # [bb, 235]
    y = pool(mm_relu(y, t2_ref, b2_ref), C2)        # [bb, 290]
    y = mm_relu(y, t3_ref, b3_ref)                  # [bb, 90]  = (h, w, c) flatten
    hid = mm_relu(y, wf_ref, bf_ref)                # [bb, 90]  (fc1 weight pre-permuted)
    # Dropout(p=0.5): inference-mode identity.
    z = jnp.dot(hid, wo_ref[...], preferred_element_type=jnp.float32) + bo_ref[...]
    m = jnp.max(z, axis=-1, keepdims=True)
    lse = m + jnp.log(jnp.sum(jnp.exp(z - m), axis=-1, keepdims=True))
    o_ref[0] = (z - lse).astype(o_ref.dtype)        # log_softmax


# ----------------------------- weight prep (host) -----------------------------


def _conv_block_toeplitz(w, b, w_in_valid, in_stride, n_in_lanes):
    """PyTorch conv weight [Cout, Cin, 1, K] -> dense [n_in_lanes, H*Wout*Cout]
    matmul weight acting on the (h, w, c)-flattened lane axis (block-Toeplitz
    over h), plus the (h, w, c)-tiled bias row.  Lanes the convolution never
    reads (pool "wrap" positions at the end of each h block) get zero rows."""
    w = np.asarray(w, np.float32)
    b = np.asarray(b, np.float32)
    cout, cin, _, k = w.shape
    w_out = w_in_valid - k + 1
    t = np.zeros((n_in_lanes, H_IN * w_out * cout), np.float32)
    for h in range(H_IN):
        for wo in range(w_out):
            for kk in range(k):
                r0 = h * in_stride + (wo + kk) * cin
                c0 = (h * w_out + wo) * cout
                t[r0:r0 + cin, c0:c0 + cout] = w[:, :, 0, kk].T
    return jnp.asarray(t), jnp.asarray(np.tile(b, H_IN * w_out)[None, :])


def _fc1_permuted(fc1_w):
    # PyTorch fc1 input order is (c, h, w); the kernel emits (h, w, c).
    wt = jnp.asarray(fc1_w, jnp.float32).T                         # [in, out]
    return wt.reshape(C3, H_IN, W3, -1).transpose(1, 2, 0, 3).reshape(N_FEAT, -1)


# ----------------------------- wrapper ----------------------------------------


def simple_cnn_forward(x, params):
    b = x.shape[0]
    assert x.shape[1:] == (1, H_IN, W_IN)

    # One grid step handles `bb` batch items (one sublane row each); "parallel"
    # grid axis lets bigger batches split across TensorCores. For B=2: grid=(1,).
    bb = next(d for d in range(min(b, 256), 0, -1) if b % d == 0)
    g = b // bb
    x_blocks = x.astype(jnp.float32).reshape(g, bb, H_IN * W_IN)   # free reshape

    t1, b1 = _conv_block_toeplitz(params["conv1_w"], params["conv1_b"],
                                  W_IN, W_IN, H_IN * W_IN)                 # [60, 240]
    t2, b2 = _conv_block_toeplitz(params["conv2_w"], params["conv2_b"],
                                  P1, W1 * C1, H_IN * W1 * C1 - C1)        # [235, 300]
    t3, b3 = _conv_block_toeplitz(params["conv3_w"], params["conv3_b"],
                                  P2, W2 * C2, H_IN * W2 * C2 - C2)        # [290, 90]
    wf = _fc1_permuted(params["fc1_w"])
    bf = jnp.asarray(params["fc1_b"], jnp.float32).reshape(1, -1)
    wo = jnp.asarray(params["out_w"], jnp.float32).T
    bo = jnp.asarray(params["out_b"], jnp.float32).reshape(1, -1)

    def const(a):                                   # grid-invariant operand
        return pl.BlockSpec(a.shape, lambda i: (0, 0))

    out = pl.pallas_call(
        fused_cnn_kernel,
        out_shape=jax.ShapeDtypeStruct((g, bb, N_CLS), jnp.float32),
        grid=(g,),
        in_specs=[
            pl.BlockSpec((1, bb, H_IN * W_IN), lambda i: (i, 0, 0)),
            const(t1), const(b1), const(t2), const(b2), const(t3), const(b3),
            const(wf), const(bf), const(wo), const(bo),
        ],
        out_specs=pl.BlockSpec((1, bb, N_CLS), lambda i: (i, 0, 0)),
        compiler_params=pltpu.CompilerParams(dimension_semantics=("parallel",)),
    )(x_blocks, t1, b1, t2, b2, t3, b3, wf, bf, wo, bo)
    return out.reshape(b, N_CLS)


# ----------------------------- reference --------------------------------------


def reference_forward(x, params):
    dn = ("NCHW", "OIHW", "NCHW")

    def conv(y, wk, bk):
        y = jax.lax.conv_general_dilated(y, wk, (1, 1), "VALID",
                                         dimension_numbers=dn)
        return y + bk[None, :, None, None]

    def pool(y):
        return jax.lax.reduce_window(y, -jnp.inf, jax.lax.max,
                                     (1, 1, 1, 2), (1, 1, 1, 1), "VALID")

    y = pool(jax.nn.relu(conv(x, params["conv1_w"], params["conv1_b"])))
    y = pool(jax.nn.relu(conv(y, params["conv2_w"], params["conv2_b"])))
    y = jax.nn.relu(conv(y, params["conv3_w"], params["conv3_b"]))
    y = y.reshape(y.shape[0], -1)
    y = jax.nn.relu(y @ params["fc1_w"].T + params["fc1_b"])
    y = y @ params["out_w"].T + params["out_b"]
    return jax.nn.log_softmax(y, axis=-1)


# ----------------------------- main --------------------------------------------


if __name__ == "__main__":
    key = jax.random.PRNGKey(0)
    ks = jax.random.split(key, 11)
    params = {
        "conv1_w": 0.1 * jax.random.normal(ks[0], (5, 1, 1, 3), jnp.float32),
        "conv1_b": 0.1 * jax.random.normal(ks[1], (5,), jnp.float32),
        "conv2_w": 0.1 * jax.random.normal(ks[2], (10, 5, 1, 3), jnp.float32),
        "conv2_b": 0.1 * jax.random.normal(ks[3], (10,), jnp.float32),
        "conv3_w": 0.1 * jax.random.normal(ks[4], (5, 10, 1, 2), jnp.float32),
        "conv3_b": 0.1 * jax.random.normal(ks[5], (5,), jnp.float32),
        "fc1_w": 0.1 * jax.random.normal(ks[6], (90, 90), jnp.float32),
        "fc1_b": 0.1 * jax.random.normal(ks[7], (90,), jnp.float32),
        "out_w": 0.1 * jax.random.normal(ks[8], (5, 90), jnp.float32),
        "out_b": 0.1 * jax.random.normal(ks[9], (5,), jnp.float32),
    }
    x = jax.random.normal(ks[10], (2, 1, H_IN, W_IN), jnp.float32)

    out = simple_cnn_forward(x, params)
    jax.block_until_ready(out)

    ref = reference_forward(x, params)
    np.testing.assert_allclose(np.asarray(out), np.asarray(ref),
                               rtol=1e-4, atol=1e-4)
    print("KERNEL_OK")
</pallas_src>

<mosaic_0001>
module attributes {stable_mosaic.version = 11 : i64} {
  func.func @fused_cnn_kernel(%arg0: i32, %arg1: memref<1x2x60xf32, #tpu.memory_space<vmem>>, %arg2: memref<60x240xf32, #tpu.memory_space<vmem>>, %arg3: memref<1x240xf32, #tpu.memory_space<vmem>>, %arg4: memref<235x300xf32, #tpu.memory_space<vmem>>, %arg5: memref<1x300xf32, #tpu.memory_space<vmem>>, %arg6: memref<290x90xf32, #tpu.memory_space<vmem>>, %arg7: memref<1x90xf32, #tpu.memory_space<vmem>>, %arg8: memref<90x90xf32, #tpu.memory_space<vmem>>, %arg9: memref<1x90xf32, #tpu.memory_space<vmem>>, %arg10: memref<90x5xf32, #tpu.memory_space<vmem>>, %arg11: memref<1x5xf32, #tpu.memory_space<vmem>>, %arg12: memref<1x2x5xf32, #tpu.memory_space<vmem>>) attributes {dimension_semantics = [#tpu.dimension_semantics<parallel>], iteration_bounds = array<i64: 1>, scalar_prefetch = 0 : i64, scratch_operands = 0 : i64, tpu.core_type = #tpu.core_type<tc>, window_params = [{transform_indices = @transform_0, window_bounds = array<i64: 1, 2, 60>}, {pipeline_mode = #tpu.pipeline_mode<synchronous>, transform_indices = @transform_1, window_bounds = array<i64: 60, 240>}, {pipeline_mode = #tpu.pipeline_mode<synchronous>, transform_indices = @transform_2, window_bounds = array<i64: 1, 240>}, {pipeline_mode = #tpu.pipeline_mode<synchronous>, transform_indices = @transform_3, window_bounds = array<i64: 235, 300>}, {pipeline_mode = #tpu.pipeline_mode<synchronous>, transform_indices = @transform_4, window_bounds = array<i64: 1, 300>}, {pipeline_mode = #tpu.pipeline_mode<synchronous>, transform_indices = @transform_5, window_bounds = array<i64: 290, 90>}, {pipeline_mode = #tpu.pipeline_mode<synchronous>, transform_indices = @transform_6, window_bounds = array<i64: 1, 90>}, {pipeline_mode = #tpu.pipeline_mode<synchronous>, transform_indices = @transform_7, window_bounds = array<i64: 90, 90>}, {pipeline_mode = #tpu.pipeline_mode<synchronous>, transform_indices = @transform_8, window_bounds = array<i64: 1, 90>}, {pipeline_mode = #tpu.pipeline_mode<synchronous>, transform_indices = @transform_9, window_bounds = array<i64: 90, 5>}, {pipeline_mode = #tpu.pipeline_mode<synchronous>, transform_indices = @transform_10, window_bounds = array<i64: 1, 5>}, {transform_indices = @transform_11, window_bounds = array<i64: 1, 2, 5>}]} {
    %c0 = arith.constant 0 : index
    %c0_0 = arith.constant 0 : index
    %c0_1 = arith.constant 0 : index
    %0 = vector.load %arg1[%c0, %c0_0, %c0_1] : memref<1x2x60xf32, #tpu.memory_space<vmem>>, vector<1x2x60xf32>
    %1 = vector.shape_cast %0 : vector<1x2x60xf32> to vector<2x60xf32>
    %c0_2 = arith.constant 0 : index
    %c0_3 = arith.constant 0 : index
    %2 = vector.load %arg2[%c0_2, %c0_3] : memref<60x240xf32, #tpu.memory_space<vmem>>, vector<60x240xf32>
    %cst = arith.constant dense<0.000000e+00> : vector<2x240xf32>
    %3 = tpu.matmul %1, %2, %cst {dimension_numbers = #tpu.dot_dimension_numbers<[1], [0], [0], [1], [0, 0, 1, 1], [], []>} : vector<2x60xf32>, vector<60x240xf32>, vector<2x240xf32> -> vector<2x240xf32>
    %c0_4 = arith.constant 0 : index
    %c0_5 = arith.constant 0 : index
    %4 = vector.load %arg3[%c0_4, %c0_5] : memref<1x240xf32, #tpu.memory_space<vmem>>, vector<1x240xf32>
    %5 = vector.broadcast %4 : vector<1x240xf32> to vector<2x240xf32>
    %6 = arith.addf %3, %5 : vector<2x240xf32>
    %cst_6 = arith.constant 0.000000e+00 : f32
    %7 = vector.broadcast %cst_6 : f32 to vector<2x240xf32>
    %8 = arith.maximumf %6, %7 : vector<2x240xf32>
    %9 = vector.extract_strided_slice %8 {offsets = [0, 0], sizes = [2, 235], strides = [1, 1]} : vector<2x240xf32> to vector<2x235xf32>
    %10 = vector.extract_strided_slice %8 {offsets = [0, 5], sizes = [2, 235], strides = [1, 1]} : vector<2x240xf32> to vector<2x235xf32>
    %11 = arith.maximumf %9, %10 : vector<2x235xf32>
    %c0_7 = arith.constant 0 : index
    %c0_8 = arith.constant 0 : index
    %12 = vector.load %arg4[%c0_7, %c0_8] : memref<235x300xf32, #tpu.memory_space<vmem>>, vector<235x300xf32>
    %cst_9 = arith.constant dense<0.000000e+00> : vector<2x300xf32>
    %13 = tpu.matmul %11, %12, %cst_9 {dimension_numbers = #tpu.dot_dimension_numbers<[1], [0], [0], [1], [0, 0, 1, 1], [], []>} : vector<2x235xf32>, vector<235x300xf32>, vector<2x300xf32> -> vector<2x300xf32>
    %c0_10 = arith.constant 0 : index
    %c0_11 = arith.constant 0 : index
    %14 = vector.load %arg5[%c0_10, %c0_11] : memref<1x300xf32, #tpu.memory_space<vmem>>, vector<1x300xf32>
    %15 = vector.broadcast %14 : vector<1x300xf32> to vector<2x300xf32>
    %16 = arith.addf %13, %15 : vector<2x300xf32>
    %cst_12 = arith.constant 0.000000e+00 : f32
    %17 = vector.broadcast %cst_12 : f32 to vector<2x300xf32>
    %18 = arith.maximumf %16, %17 : vector<2x300xf32>
    %19 = vector.extract_strided_slice %18 {offsets = [0, 0], sizes = [2, 290], strides = [1, 1]} : vector<2x300xf32> to vector<2x290xf32>
    %20 = vector.extract_strided_slice %18 {offsets = [0, 10], sizes = [2, 290], strides = [1, 1]} : vector<2x300xf32> to vector<2x290xf32>
    %21 = arith.maximumf %19, %20 : vector<2x290xf32>
    %c0_13 = arith.constant 0 : index
    %c0_14 = arith.constant 0 : index
    %22 = vector.load %arg6[%c0_13, %c0_14] : memref<290x90xf32, #tpu.memory_space<vmem>>, vector<290x90xf32>
    %cst_15 = arith.constant dense<0.000000e+00> : vector<2x90xf32>
    %23 = tpu.matmul %21, %22, %cst_15 {dimension_numbers = #tpu.dot_dimension_numbers<[1], [0], [0], [1], [0, 0, 1, 1], [], []>} : vector<2x290xf32>, vector<290x90xf32>, vector<2x90xf32> -> vector<2x90xf32>
    %c0_16 = arith.constant 0 : index
    %c0_17 = arith.constant 0 : index
    %24 = vector.load %arg7[%c0_16, %c0_17] : memref<1x90xf32, #tpu.memory_space<vmem>>, vector<1x90xf32>
    %25 = vector.broadcast %24 : vector<1x90xf32> to vector<2x90xf32>
    %26 = arith.addf %23, %25 : vector<2x90xf32>
    %cst_18 = arith.constant 0.000000e+00 : f32
    %27 = vector.broadcast %cst_18 : f32 to vector<2x90xf32>
    %28 = arith.maximumf %26, %27 : vector<2x90xf32>
    %c0_19 = arith.constant 0 : index
    %c0_20 = arith.constant 0 : index
    %29 = vector.load %arg8[%c0_19, %c0_20] : memref<90x90xf32, #tpu.memory_space<vmem>>, vector<90x90xf32>
    %cst_21 = arith.constant dense<0.000000e+00> : vector<2x90xf32>
    %30 = tpu.matmul %28, %29, %cst_21 {dimension_numbers = #tpu.dot_dimension_numbers<[1], [0], [0], [1], [0, 0, 1, 1], [], []>} : vector<2x90xf32>, vector<90x90xf32>, vector<2x90xf32> -> vector<2x90xf32>
    %c0_22 = arith.constant 0 : index
    %c0_23 = arith.constant 0 : index
    %31 = vector.load %arg9[%c0_22, %c0_23] : memref<1x90xf32, #tpu.memory_space<vmem>>, vector<1x90xf32>
    %32 = vector.broadcast %31 : vector<1x90xf32> to vector<2x90xf32>
    %33 = arith.addf %30, %32 : vector<2x90xf32>
    %cst_24 = arith.constant 0.000000e+00 : f32
    %34 = vector.broadcast %cst_24 : f32 to vector<2x90xf32>
    %35 = arith.maximumf %33, %34 : vector<2x90xf32>
    %c0_25 = arith.constant 0 : index
    %c0_26 = arith.constant 0 : index
    %36 = vector.load %arg10[%c0_25, %c0_26] : memref<90x5xf32, #tpu.memory_space<vmem>>, vector<90x5xf32>
    %cst_27 = arith.constant dense<0.000000e+00> : vector<2x5xf32>
    %37 = tpu.matmul %35, %36, %cst_27 {dimension_numbers = #tpu.dot_dimension_numbers<[1], [0], [0], [1], [0, 0, 1, 1], [], []>} : vector<2x90xf32>, vector<90x5xf32>, vector<2x5xf32> -> vector<2x5xf32>
    %c0_28 = arith.constant 0 : index
    %c0_29 = arith.constant 0 : index
    %38 = vector.load %arg11[%c0_28, %c0_29] : memref<1x5xf32, #tpu.memory_space<vmem>>, vector<1x5xf32>
    %39 = vector.broadcast %38 : vector<1x5xf32> to vector<2x5xf32>
    %40 = arith.addf %37, %39 : vector<2x5xf32>
    %cst_30 = arith.constant dense<0xFF800000> : vector<2xf32>
    %41 = vector.multi_reduction <maximumf>, %40, %cst_30 [1] : vector<2x5xf32> to vector<2xf32>
    %42 = vector.shape_cast %41 : vector<2xf32> to vector<2x1xf32>
    %43 = vector.broadcast %42 : vector<2x1xf32> to vector<2x5xf32>
    %44 = arith.subf %40, %43 : vector<2x5xf32>
    %45 = math.exp %44 : vector<2x5xf32>
    %cst_31 = arith.constant dense<0.000000e+00> : vector<2xf32>
    %46 = vector.multi_reduction <add>, %45, %cst_31 [1] : vector<2x5xf32> to vector<2xf32>
    %47 = vector.shape_cast %46 : vector<2xf32> to vector<2x1xf32>
    %48 = math.log %47 : vector<2x1xf32>
    %49 = arith.addf %42, %48 : vector<2x1xf32>
    %50 = vector.broadcast %49 : vector<2x1xf32> to vector<2x5xf32>
    %51 = arith.subf %40, %50 : vector<2x5xf32>
    %c0_32 = arith.constant 0 : index
    %c0_33 = arith.constant 0 : index
    %c0_34 = arith.constant 0 : index
    %52 = vector.load %arg12[%c0_32, %c0_33, %c0_34] : memref<1x2x5xf32, #tpu.memory_space<vmem>>, vector<1x2x5xf32>
    %53 = vector.shape_cast %52 : vector<1x2x5xf32> to vector<2x5xf32>
    %54 = vector.shape_cast %51 : vector<2x5xf32> to vector<1x2x5xf32>
    tpu.vector_store %arg12[%c0_32, %c0_33, %c0_34], %54 {strides = array<i32>} : memref<1x2x5xf32, #tpu.memory_space<vmem>>, vector<1x2x5xf32>,
    return
  }
  func.func @transform_0(%arg0: i32) -> (i32, i32, i32) {
    %c0_i32 = arith.constant 0 : i32
    %c0_i32_0 = arith.constant 0 : i32
    %c0_i32_1 = arith.constant 0 : i32
    return %arg0, %c0_i32, %c0_i32_0 : i32, i32, i32
  }
  func.func @transform_1(%arg0: i32) -> (i32, i32) {
    %c0_i32 = arith.constant 0 : i32
    %c0_i32_0 = arith.constant 0 : i32
    %c0_i32_1 = arith.constant 0 : i32
    return %c0_i32, %c0_i32_0 : i32, i32
  }
  func.func @transform_2(%arg0: i32) -> (i32, i32) {
    %c0_i32 = arith.constant 0 : i32
    %c0_i32_0 = arith.constant 0 : i32
    %c0_i32_1 = arith.constant 0 : i32
    return %c0_i32, %c0_i32_0 : i32, i32
  }
  func.func @transform_3(%arg0: i32) -> (i32, i32) {
    %c0_i32 = arith.constant 0 : i32
    %c0_i32_0 = arith.constant 0 : i32
    %c0_i32_1 = arith.constant 0 : i32
    return %c0_i32, %c0_i32_0 : i32, i32
  }
  func.func @transform_4(%arg0: i32) -> (i32, i32) {
    %c0_i32 = arith.constant 0 : i32
    %c0_i32_0 = arith.constant 0 : i32
    %c0_i32_1 = arith.constant 0 : i32
    return %c0_i32, %c0_i32_0 : i32, i32
  }
  func.func @transform_5(%arg0: i32) -> (i32, i32) {
    %c0_i32 = arith.constant 0 : i32
    %c0_i32_0 = arith.constant 0 : i32
    %c0_i32_1 = arith.constant 0 : i32
    return %c0_i32, %c0_i32_0 : i32, i32
  }
  func.func @transform_6(%arg0: i32) -> (i32, i32) {
    %c0_i32 = arith.constant 0 : i32
    %c0_i32_0 = arith.constant 0 : i32
    %c0_i32_1 = arith.constant 0 : i32
    return %c0_i32, %c0_i32_0 : i32, i32
  }
  func.func @transform_7(%arg0: i32) -> (i32, i32) {
    %c0_i32 = arith.constant 0 : i32
    %c0_i32_0 = arith.constant 0 : i32
    %c0_i32_1 = arith.constant 0 : i32
    return %c0_i32, %c0_i32_0 : i32, i32
  }
  func.func @transform_8(%arg0: i32) -> (i32, i32) {
    %c0_i32 = arith.constant 0 : i32
    %c0_i32_0 = arith.constant 0 : i32
    %c0_i32_1 = arith.constant 0 : i32
    return %c0_i32, %c0_i32_0 : i32, i32
  }
  func.func @transform_9(%arg0: i32) -> (i32, i32) {
    %c0_i32 = arith.constant 0 : i32
    %c0_i32_0 = arith.constant 0 : i32
    %c0_i32_1 = arith.constant 0 : i32
    return %c0_i32, %c0_i32_0 : i32, i32
  }
  func.func @transform_10(%arg0: i32) -> (i32, i32) {
    %c0_i32 = arith.constant 0 : i32
    %c0_i32_0 = arith.constant 0 : i32
    %c0_i32_1 = arith.constant 0 : i32
    return %c0_i32, %c0_i32_0 : i32, i32
  }
  func.func @transform_11(%arg0: i32) -> (i32, i32, i32) {
    %c0_i32 = arith.constant 0 : i32
    %c0_i32_0 = arith.constant 0 : i32
    %c0_i32_1 = arith.constant 0 : i32
    return %arg0, %c0_i32, %c0_i32_0 : i32, i32, i32
  }
}

</mosaic_0001>

<llo_original>
// kernel: tpu_custom_call.1
$region0: #{tpu_custom_call.1}
  #allocation0 [shape = 'u32[]', space=smem, size = 0x4, offset = 0x4, fixed_abs, tag = 'smem constant byte address 0x4 - core index']
  #allocation1 [shape = 'u32[144,128]{1,0:T(1,128)}', space=vmem, size = 0x12000, scoped, tag = 'internal scratch']
  %s0 = inlined_call_operand.vmem [shape: f32[1,2,60], index: 0, kind: input, shape index: {}]
  %s1 = inlined_call_operand.vmem [shape: f32[60,240], index: 1, kind: input, shape index: {}]
  %s2 = inlined_call_operand.vmem [shape: f32[1,240], index: 2, kind: input, shape index: {}]
  %s3 = inlined_call_operand.vmem [shape: f32[235,300], index: 3, kind: input, shape index: {}]
  %s4 = inlined_call_operand.vmem [shape: f32[1,300], index: 4, kind: input, shape index: {}]
  %s5 = inlined_call_operand.vmem [shape: f32[290,90], index: 5, kind: input, shape index: {}]
  %s6 = inlined_call_operand.vmem [shape: f32[1,90], index: 6, kind: input, shape index: {}]
  %s7 = inlined_call_operand.vmem [shape: f32[90,90], index: 7, kind: input, shape index: {}]
  %s8 = inlined_call_operand.vmem [shape: f32[1,90], index: 8, kind: input, shape index: {}]
  %s9 = inlined_call_operand.vmem [shape: f32[90,5], index: 9, kind: input, shape index: {}]
  %s10 = inlined_call_operand.vmem [shape: f32[1,5], index: 10, kind: input, shape index: {}]
  %s11 = inlined_call_operand.hbm [shape: f32[1,2,5], index: 11, kind: output, shape index: {}]
  %s12 = sld [smem:[#allocation0]]
  $region54: #{tpu_custom_call.1} parent=0
    _
  %s14 = ssub.s32 1, %s12
  %s15 = scalar_select 0, %s14, %s12
  $region1: #{tpu_custom_call.1} parent=0
    #allocation2 [shape = 'u8[1024]{0}', space=vmem, size = 0x400, scoped, tag = 'output window, operand 0, single buffered']
    #allocation3 [shape = 's32[1]{0}', space=sflag, size = 0x4, scoped, tag = 'scoped memory for tpu_custom_call.1']
    %16 = vsyncpa [#allocation3], 0
    // Predicated region
    $region2: #{tpu_custom_call.1} parent=1 // pred_check
      _
    $region3: #{tpu_custom_call.1} parent=1 // pred_check_branch
      %18 = sbr.rel (0) target = $region5
    $region4: #{tpu_custom_call.1} parent=1 // pred_region
      _
    $region5: #{tpu_custom_call.1} parent=1 // pred_fallthru
      _
    // Predicated region
    $region6: #{tpu_custom_call.1} parent=1 // pred_check
      _
    $region7: #{tpu_custom_call.1} parent=1 // pred_check_branch
      %20 = sbr.rel (0) target = $region9
    $region8: #{tpu_custom_call.1} parent=1 // pred_region
      _
    $region9: #{tpu_custom_call.1} parent=1 // pred_fallthru
      _
    // Predicated region
    $region10: #{tpu_custom_call.1} parent=1 // pred_check
      _
    $region11: #{tpu_custom_call.1} parent=1 // pred_check_branch
      %22 = sbr.rel (0) target = $region13
    $region12: #{tpu_custom_call.1} parent=1 // pred_region
      _
    $region13: #{tpu_custom_call.1} parent=1 // pred_fallthru
      _
    // Predicated region
    $region14: #{tpu_custom_call.1} parent=1 // pred_check
      _
    $region15: #{tpu_custom_call.1} parent=1 // pred_check_branch
      %24 = sbr.rel (0) target = $region17
    $region16: #{tpu_custom_call.1} parent=1 // pred_region
      _
    $region17: #{tpu_custom_call.1} parent=1 // pred_fallthru
      _
    // Predicated region
    $region18: #{tpu_custom_call.1} parent=1 // pred_check
      _
    $region19: #{tpu_custom_call.1} parent=1 // pred_check_branch
      %26 = sbr.rel (0) target = $region21
    $region20: #{tpu_custom_call.1} parent=1 // pred_region
      _
    $region21: #{tpu_custom_call.1} parent=1 // pred_fallthru
      _
    // Predicated region
    $region22: #{tpu_custom_call.1} parent=1 // pred_check
      _
    $region23: #{tpu_custom_call.1} parent=1 // pred_check_branch
      %28 = sbr.rel (0) target = $region25
    $region24: #{tpu_custom_call.1} parent=1 // pred_region
      _
    $region25: #{tpu_custom_call.1} parent=1 // pred_fallthru
      _
    // Predicated region
    $region26: #{tpu_custom_call.1} parent=1 // pred_check
      _
    $region27: #{tpu_custom_call.1} parent=1 // pred_check_branch
      %30 = sbr.rel (0) target = $region29
    $region28: #{tpu_custom_call.1} parent=1 // pred_region
      _
    $region29: #{tpu_custom_call.1} parent=1 // pred_fallthru
      _
    // Predicated region
    $region30: #{tpu_custom_call.1} parent=1 // pred_check
      _
    $region31: #{tpu_custom_call.1} parent=1 // pred_check_branch
      %32 = sbr.rel (0) target = $region33
    $region32: #{tpu_custom_call.1} parent=1 // pred_region
      _
    $region33: #{tpu_custom_call.1} parent=1 // pred_fallthru
      _
    // Predicated region
    $region34: #{tpu_custom_call.1} parent=1 // pred_check
      _
    $region35: #{tpu_custom_call.1} parent=1 // pred_check_branch
      %34 = sbr.rel (0) target = $region37
    $region36: #{tpu_custom_call.1} parent=1 // pred_region
      _
    $region37: #{tpu_custom_call.1} parent=1 // pred_fallthru
      _
    // Predicated region
    $region38: #{tpu_custom_call.1} parent=1 // pred_check
      _
    $region39: #{tpu_custom_call.1} parent=1 // pred_check_branch
      %36 = sbr.rel (0) target = $region41
    $region40: #{tpu_custom_call.1} parent=1 // pred_region
      _
    $region41: #{tpu_custom_call.1} parent=1 // pred_fallthru
      _
    // Predicated region
    $region42: #{tpu_custom_call.1} parent=1 // pred_check
      _
    $region43: #{tpu_custom_call.1} parent=1 // pred_check_branch
      %38 = sbr.rel (0) target = $region45
    $region44: #{tpu_custom_call.1} parent=1 // pred_region
      _
    $region45: #{tpu_custom_call.1} parent=1 // pred_fallthru
      _
    %v39 = vld [vmem:[%s0] sm:$0x3]
    %v40 = vld [vmem:[%s1] sm:$0xff]
    %v41 = vld [vmem:[%s1 + $0x8] sm:$0xff]
    %v42 = vld [vmem:[%s1 + $0x10] sm:$0xff]
    %v43 = vld [vmem:[%s1 + $0x18] sm:$0xff]
    %v44 = vld [vmem:[%s1 + $0x20] sm:$0xff]
    %v45 = vld [vmem:[%s1 + $0x28] sm:$0xff]
    %v46 = vld [vmem:[%s1 + $0x30] sm:$0xff]
    %v47 = vld [vmem:[%s1 + $0x38] sm:$0xff]
    %v48 = vld [vmem:[%s1 + $0x40] sm:$0xff]
    %v49 = vld [vmem:[%s1 + $0x48] sm:$0xff]
    %v50 = vld [vmem:[%s1 + $0x50] sm:$0xff]
    %v51 = vld [vmem:[%s1 + $0x58] sm:$0xff]
    %v52 = vld [vmem:[%s1 + $0x60] sm:$0xff]
    %v53 = vld [vmem:[%s1 + $0x68] sm:$0xff]
    %v54 = vld [vmem:[%s1 + $0x70] sm:$0xf]
    %v55 = vld [vmem:[%s1 + $0x78] sm:$0xf]
    %v56 = vld [vmem:[%s2] sm:$0x3]
    %v58 = vlaneseq
    %v59 = vshrl.u32 %v58, 7
    %v60 = vsub.s32 0, %v59
    %v61 = vrot.slane %v56, %v60
    %v62 = vlaneseq
    %v63 = vshrl.u32 %v62, 7
    %v64 = vsub.s32 1, %v63
    %v65 = vrot.slane %v56, %v64
    %vm68 = vcmask 490496
    %v70 = vsel %vm68, %v39, 0
    %vm72 = vcmask 1043456
    %v74 = vsel %vm72, %v54, 0
    %v77 = vsel %vm72, %v55, 0
    %79 = vmatprep.subr.mxu0 %v41
    %80 = vmatpush1.msra.mxu0 %v40
    %81 = vmatprep.subr.mxu0 %v43
    %82 = vmatpush1.msra.mxu0 %v42
    %83 = vmatprep.subr.mxu0 %v45
    %84 = vmatpush1.msra.mxu0 %v44
    %85 = vmatprep.subr.mxu0 %v47
    %86 = vmatpush1.msra.mxu0 %v46
    %87 = vmatprep.subr.mxu0 %v49
    %88 = vmatpush1.msra.mxu0 %v48
    %89 = vmatprep.subr.mxu0 %v51
    %90 = vmatpush1.msra.mxu0 %v50
    %91 = vmatprep.subr.mxu0 %v53
    %92 = vmatpush1.msra.mxu0 %v52
    %93 = vmatprep.subr.mxu0 %v77
    %94 = vmatpush1.msra.mxu0 %v74
    %95 = vmatprep.subr.mxu0 0.0
    %96 = vmatpush1.msra.mxu0 0.0
    %97 = vmatprep.subr.mxu0 0.0
    %98 = vmatpush1.msra.mxu0 0.0
    %99 = vmatprep.subr.mxu0 0.0
    %100 = vmatpush1.msra.mxu0 0.0
    %101 = vmatprep.subr.mxu0 0.0
    %102 = vmatpush1.msra.mxu0 0.0
    %103 = vmatprep.subr.mxu0 0.0
    %104 = vmatpush1.msra.mxu0 0.0
    %105 = vmatprep.subr.mxu0 0.0
    %106 = vmatpush1.msra.mxu0 0.0
    %107 = vmatprep.subr.mxu0 0.0
    %108 = vmatpush1.msra.mxu0 0.0
    %109 = vmatprep.subr.mxu0 0.0
    %110 = vmatpush1.msra.mxu0 0.0
    %111 = vmatprep.subr.mxu0 0.0
    %112 = vmatpush1.msra.mxu0 0.0
    %113 = vmatprep.subr.mxu0 0.0
    %114 = vmatpush1.msra.mxu0 0.0
    %115 = vmatprep.subr.mxu0 0.0
    %116 = vmatpush1.msra.mxu0 0.0
    %117 = vmatprep.subr.mxu0 0.0
    %118 = vmatpush1.msra.mxu0 0.0
    %119 = vmatprep.subr.mxu0 0.0
    %120 = vmatpush1.msra.mxu0 0.0
    %121 = vmatprep.subr.mxu0 0.0
    %122 = vmatpush1.msra.mxu0 0.0
    %123 = vmatprep.subr.mxu0 0.0
    %124 = vmatpush1.msra.mxu0 0.0
    %125 = vmatprep.subr.mxu0 0.0
    %126 = vmatpush1.msra.mxu0 0.0
    %127 = vmatprep.subr.mxu0 0.0
    %128 = vmatpush1.msra.mxu0 0.0
    %129 = vmatprep.subr.mxu0 0.0
    %130 = vmatpush1.msra.mxu0 0.0
    %131 = vmatprep.subr.mxu0 0.0
    %132 = vmatpush1.msra.mxu0 0.0
    %133 = vmatprep.subr.mxu0 0.0
    %134 = vmatpush1.msra.mxu0 0.0
    %135 = vmatprep.subr.mxu0 0.0
    %136 = vmatpush1.msra.mxu0 0.0
    %137 = vmatprep.subr.mxu0 0.0
    %138 = vmatpush1.msra.mxu0 0.0
    %139 = vmatprep.subr.mxu0 0.0
    %140 = vmatpush1.msra.mxu0 0.0
    %141 = vmatprep.subr.mxu0 0.0
    %142 = vmatpush1.msra.mxu0 0.0
    %143 = vmatprep.mubr.f32.mxu0 0.0
    %144 = vmatmul.mubr.f32.gmra.mrb[0].mxu0 %v70
    %v145 = vpop.f32.mrb[0].mxu0
    %v146 = vadd.f32 %v61, %v145
    %v147 = vpop.f32.mrb[0].mxu0
    %v148 = vadd.f32 %v65, %v147
    %149 = vdwg.mxu0
    %v150 = vmax.f32 %v146, 0.0
    %v151 = vmax.f32 %v148, 0.0
    %154 = vrot.lane.b32.xlu0 %v150, 123
    %v155 = vpop.permute.xlu0 %154
    %156 = vrot.lane.b32.xlu0 %v151, 123
    %v157 = vpop.permute.xlu0 %156
    %vm158 = vcmask 1006592
    %v159 = vsel %vm158, %v155, %v157
    %v162 = vmax.f32 %v150, %v159
    %v163 = vmax.f32 %v151, %v157
    %v164 = vld [vmem:[%s3] sm:$0xff]
    %v165 = vld [vmem:[%s3 + $0x8] sm:$0xff]
    %v166 = vld [vmem:[%s3 + $0x10] sm:$0xff]
    %v167 = vld [vmem:[%s3 + $0x18] sm:$0xff]
    %v168 = vld [vmem:[%s3 + $0x20] sm:$0xff]
    %v169 = vld [vmem:[%s3 + $0x28] sm:$0xff]
    %v170 = vld [vmem:[%s3 + $0x30] sm:$0xff]
    %v171 = vld [vmem:[%s3 + $0x38] sm:$0xff]
    %v172 = vld [vmem:[%s3 + $0x40] sm:$0xff]
    %v173 = vld [vmem:[%s3 + $0x48] sm:$0xff]
    %v174 = vld [vmem:[%s3 + $0x50] sm:$0xff]
    %v175 = vld [vmem:[%s3 + $0x58] sm:$0xff]
    %v176 = vld [vmem:[%s3 + $0x60] sm:$0xff]
    %v177 = vld [vmem:[%s3 + $0x68] sm:$0xff]
    %v178 = vld [vmem:[%s3 + $0x70] sm:$0xff]
    %v179 = vld [vmem:[%s3 + $0x78] sm:$0xff]
    %v180 = vld [vmem:[%s3 + $0x80] sm:$0xff]
    %v181 = vld [vmem:[%s3 + $0x88] sm:$0xff]
    %v182 = vld [vmem:[%s3 + $0x90] sm:$0xff]
    %v183 = vld [vmem:[%s3 + $0x98] sm:$0xff]
    %v184 = vld [vmem:[%s3 + $0xa0] sm:$0xff]
    %v185 = vld [vmem:[%s3 + $0xa8] sm:$0xff]
    %v186 = vld [vmem:[%s3 + $0xb0] sm:$0xff]
    %v187 = vld [vmem:[%s3 + $0xb8] sm:$0xff]
    %v188 = vld [vmem:[%s3 + $0xc0] sm:$0xff]
    %v189 = vld [vmem:[%s3 + $0xc8] sm:$0xff]
    %v190 = vld [vmem:[%s3 + $0xd0] sm:$0xff]
    %v191 = vld [vmem:[%s3 + $0xd8] sm:$0xff]
    %v192 = vld [vmem:[%s3 + $0xe0] sm:$0xff]
    %v193 = vld [vmem:[%s3 + $0xe8] sm:$0xff]
    %v194 = vld [vmem:[%s3 + $0xf0] sm:$0xff]
    %v195 = vld [vmem:[%s3 + $0xf8] sm:$0xff]
    %v196 = vld [vmem:[%s3 + $0x100] sm:$0xff]
    %v197 = vld [vmem:[%s3 + $0x108] sm:$0xff]
    %v198 = vld [vmem:[%s3 + $0x110] sm:$0xff]
    %v199 = vld [vmem:[%s3 + $0x118] sm:$0xff]
    %v200 = vld [vmem:[%s3 + $0x120] sm:$0xff]
    %v201 = vld [vmem:[%s3 + $0x128] sm:$0xff]
    %v202 = vld [vmem:[%s3 + $0x130] sm:$0xff]
    %v203 = vld [vmem:[%s3 + $0x138] sm:$0xff]
    %v204 = vld [vmem:[%s3 + $0x140] sm:$0xff]
    %v205 = vld [vmem:[%s3 + $0x148] sm:$0xff]
    %v206 = vld [vmem:[%s3 + $0x150] sm:$0xff]
    %v207 = vld [vmem:[%s3 + $0x158] sm:$0xff]
    %v208 = vld [vmem:[%s3 + $0x160] sm:$0xff]
    %v209 = vld [vmem:[%s3 + $0x168] sm:$0xff]
    %v210 = vld [vmem:[%s3 + $0x170] sm:$0xff]
    %v211 = vld [vmem:[%s3 + $0x178] sm:$0xff]
    %v212 = vld [vmem:[%s3 + $0x180] sm:$0xff]
    %v213 = vld [vmem:[%s3 + $0x188] sm:$0xff]
    %v214 = vld [vmem:[%s3 + $0x190] sm:$0xff]
    %v215 = vld [vmem:[%s3 + $0x198] sm:$0xff]
    %v216 = vld [vmem:[%s3 + $0x1a0] sm:$0xff]
    %v217 = vld [vmem:[%s3 + $0x1a8] sm:$0xff]
    %v218 = vld [vmem:[%s3 + $0x1b0] sm:$0xff]
    %v219 = vld [vmem:[%s3 + $0x1b8] sm:$0xff]
    %v220 = vld [vmem:[%s3 + $0x1c0] sm:$0xff]
    %v221 = vld [vmem:[%s3 + $0x1c8] sm:$0xff]
    %v222 = vld [vmem:[%s3 + $0x1d0] sm:$0xff]
    %v223 = vld [vmem:[%s3 + $0x1d8] sm:$0xff]
    %v224 = vld [vmem:[%s3 + $0x1e0] sm:$0xff]
    %v225 = vld [vmem:[%s3 + $0x1e8] sm:$0xff]
    %v226 = vld [vmem:[%s3 + $0x1f0] sm:$0xff]
    %v227 = vld [vmem:[%s3 + $0x1f8] sm:$0xff]
    %v228 = vld [vmem:[%s3 + $0x200] sm:$0xff]
    %v229 = vld [vmem:[%s3 + $0x208] sm:$0xff]
    %v230 = vld [vmem:[%s3 + $0x210] sm:$0xff]
    %v231 = vld [vmem:[%s3 + $0x218] sm:$0xff]
    %v232 = vld [vmem:[%s3 + $0x220] sm:$0xff]
    %v233 = vld [vmem:[%s3 + $0x228] sm:$0xff]
    %v234 = vld [vmem:[%s3 + $0x230] sm:$0xff]
    %v235 = vld [vmem:[%s3 + $0x238] sm:$0xff]
    %v236 = vld [vmem:[%s3 + $0x240] sm:$0xff]
    %v237 = vld [vmem:[%s3 + $0x248] sm:$0xff]
    %v238 = vld [vmem:[%s3 + $0x250] sm:$0xff]
    %v239 = vld [vmem:[%s3 + $0x258] sm:$0xff]
    %v240 = vld [vmem:[%s3 + $0x260] sm:$0xff]
    %v241 = vld [vmem:[%s3 + $0x268] sm:$0xff]
    %v242 = vld [vmem:[%s3 + $0x270] sm:$0xff]
    %v243 = vld [vmem:[%s3 + $0x278] sm:$0xff]
    %v244 = vld [vmem:[%s3 + $0x280] sm:$0xff]
    %v245 = vld [vmem:[%s3 + $0x288] sm:$0xff]
    %v246 = vld [vmem:[%s3 + $0x290] sm:$0xff]
    %v247 = vld [vmem:[%s3 + $0x298] sm:$0xff]
    %v248 = vld [vmem:[%s3 + $0x2a0] sm:$0xff]
    %v249 = vld [vmem:[%s3 + $0x2a8] sm:$0xff]
    %v250 = vld [vmem:[%s3 + $0x2b0] sm:$0xff]
    %v251 = vld [vmem:[%s3 + $0x2b8] sm:$0x7]
    %v252 = vld [vmem:[%s3 + $0x2c0] sm:$0x7]
    %v253 = vld [vmem:[%s3 + $0x2c8] sm:$0x7]
    %v254 = vld [vmem:[%s4] sm:$0x7]
    %v256 = vlaneseq
    %v257 = vshrl.u32 %v256, 7
    %v258 = vsub.s32 0, %v257
    %v259 = vrot.slane %v254, %v258
    %v260 = vlaneseq
    %v261 = vshrl.u32 %v260, 7
    %v262 = vsub.s32 1, %v261
    %v263 = vrot.slane %v254, %v262
    %v264 = vlaneseq
    %v265 = vshrl.u32 %v264, 7
    %v266 = vsub.s32 2, %v265
    %v267 = vrot.slane %v254, %v266
    %vm271 = vcmask 875520
    %v273 = vsel %vm271, %v163, 0
    %vm275 = vcmask 1042432
    %v277 = vsel %vm275, %v251, 0
    %v280 = vsel %vm275, %v252, 0
    %v283 = vsel %vm275, %v253, 0
    %285 = vmatprep.subr.mxu0 %v165
    %286 = vmatpush1.msra.mxu0 %v164
    %287 = vmatprep.subr.mxu0 %v168
    %288 = vmatpush1.msra.mxu0 %v167
    %289 = vmatprep.subr.mxu0 %v171
    %290 = vmatpush1.msra.mxu0 %v170
    %291 = vmatprep.subr.mxu0 %v174
    %292 = vmatpush1.msra.mxu0 %v173
    %293 = vmatprep.subr.mxu0 %v177
    %294 = vmatpush1.msra.mxu0 %v176
    %295 = vmatprep.subr.mxu0 %v180
    %296 = vmatpush1.msra.mxu0 %v179
    %297 = vmatprep.subr.mxu0 %v183
    %298 = vmatpush1.msra.mxu0 %v182
    %299 = vmatprep.subr.mxu0 %v186
    %300 = vmatpush1.msra.mxu0 %v185
    %301 = vmatprep.subr.mxu0 %v189
    %302 = vmatpush1.msra.mxu0 %v188
    %303 = vmatprep.subr.mxu0 %v192
    %304 = vmatpush1.msra.mxu0 %v191
    %305 = vmatprep.subr.mxu0 %v195
    %306 = vmatpush1.msra.mxu0 %v194
    %307 = vmatprep.subr.mxu0 %v198
    %308 = vmatpush1.msra.mxu0 %v197
    %309 = vmatprep.subr.mxu0 %v201
    %310 = vmatpush1.msra.mxu0 %v200
    %311 = vmatprep.subr.mxu0 %v204
    %312 = vmatpush1.msra.mxu0 %v203
    %313 = vmatprep.subr.mxu0 %v207
    %314 = vmatpush1.msra.mxu0 %v206
    %315 = vmatprep.subr.mxu0 %v210
    %316 = vmatpush1.msra.mxu0 %v209
    %317 = vmatprep.subr.mxu0 %v213
    %318 = vmatpush1.msra.mxu0 %v212
    %319 = vmatprep.subr.mxu0 %v216
    %320 = vmatpush1.msra.mxu0 %v215
    %321 = vmatprep.subr.mxu0 %v219
    %322 = vmatpush1.msra.mxu0 %v218
    %323 = vmatprep.subr.mxu0 %v222
    %324 = vmatpush1.msra.mxu0 %v221
    %325 = vmatprep.subr.mxu0 %v225
    %326 = vmatpush1.msra.mxu0 %v224
    %327 = vmatprep.subr.mxu0 %v228
    %328 = vmatpush1.msra.mxu0 %v227
    %329 = vmatprep.subr.mxu0 %v231
    %330 = vmatpush1.msra.mxu0 %v230
    %331 = vmatprep.subr.mxu0 %v234
    %332 = vmatpush1.msra.mxu0 %v233
    %333 = vmatprep.subr.mxu0 %v237
    %334 = vmatpush1.msra.mxu0 %v236
    %335 = vmatprep.subr.mxu0 %v240
    %336 = vmatpush1.msra.mxu0 %v239
    %337 = vmatprep.subr.mxu0 %v243
    %338 = vmatpush1.msra.mxu0 %v242
    %339 = vmatprep.subr.mxu0 %v246
    %340 = vmatpush1.msra.mxu0 %v245
    %341 = vmatprep.subr.mxu0 %v249
    %342 = vmatpush1.msra.mxu0 %v248
    %343 = vmatprep.subr.mxu0 %v280
    %344 = vmatpush1.msra.mxu0 %v277
    %345 = vmatprep.subr.mxu0 0.0
    %346 = vmatpush1.msra.mxu0 0.0
    %347 = vmatprep.subr.mxu0 0.0
    %348 = vmatpush1.msra.mxu0 0.0
    %349 = vmatprep.mubr.f32.mxu0 %v273
    %350 = vmatmul.mubr.f32.gmra.mrb[0].mxu0 %v162
    %v351 = vpop.f32.mrb[0].mxu0
    %v352 = vadd.f32 %v259, %v351
    %v353 = vpop.f32.mrb[0].mxu0
    %v354 = vadd.f32 %v263, %v353
    %355 = vdwg.mxu0
    %356 = vmatprep.subr.mxu0 0.0
    %357 = vmatpush1.msra.mxu0 %v166
    %358 = vmatprep.subr.mxu0 0.0
    %359 = vmatpush1.msra.mxu0 %v169
    %360 = vmatprep.subr.mxu0 0.0
    %361 = vmatpush1.msra.mxu0 %v172
    %362 = vmatprep.subr.mxu0 0.0
    %363 = vmatpush1.msra.mxu0 %v175
    %364 = vmatprep.subr.mxu0 0.0
    %365 = vmatpush1.msra.mxu0 %v178
    %366 = vmatprep.subr.mxu0 0.0
    %367 = vmatpush1.msra.mxu0 %v181
    %368 = vmatprep.subr.mxu0 0.0
    %369 = vmatpush1.msra.mxu0 %v184
    %370 = vmatprep.subr.mxu0 0.0
    %371 = vmatpush1.msra.mxu0 %v187
    %372 = vmatprep.subr.mxu0 0.0
    %373 = vmatpush1.msra.mxu0 %v190
    %374 = vmatprep.subr.mxu0 0.0
    %375 = vmatpush1.msra.mxu0 %v193
    %376 = vmatprep.subr.mxu0 0.0
    %377 = vmatpush1.msra.mxu0 %v196
    %378 = vmatprep.subr.mxu0 0.0
    %379 = vmatpush1.msra.mxu0 %v199
    %380 = vmatprep.subr.mxu0 0.0
    %381 = vmatpush1.msra.mxu0 %v202
    %382 = vmatprep.subr.mxu0 0.0
    %383 = vmatpush1.msra.mxu0 %v205
    %384 = vmatprep.subr.mxu0 0.0
    %385 = vmatpush1.msra.mxu0 %v208
    %386 = vmatprep.subr.mxu0 0.0
    %387 = vmatpush1.msra.mxu0 %v211
    %388 = vmatprep.subr.mxu0 0.0
    %389 = vmatpush1.msra.mxu0 %v214
    %390 = vmatprep.subr.mxu0 0.0
    %391 = vmatpush1.msra.mxu0 %v217
    %392 = vmatprep.subr.mxu0 0.0
    %393 = vmatpush1.msra.mxu0 %v220
    %394 = vmatprep.subr.mxu0 0.0
    %395 = vmatpush1.msra.mxu0 %v223
    %396 = vmatprep.subr.mxu0 0.0
    %397 = vmatpush1.msra.mxu0 %v226
    %398 = vmatprep.subr.mxu0 0.0
    %399 = vmatpush1.msra.mxu0 %v229
    %400 = vmatprep.subr.mxu0 0.0
    %401 = vmatpush1.msra.mxu0 %v232
    %402 = vmatprep.subr.mxu0 0.0
    %403 = vmatpush1.msra.mxu0 %v235
    %404 = vmatprep.subr.mxu0 0.0
    %405 = vmatpush1.msra.mxu0 %v238
    %406 = vmatprep.subr.mxu0 0.0
    %407 = vmatpush1.msra.mxu0 %v241
    %408 = vmatprep.subr.mxu0 0.0
    %409 = vmatpush1.msra.mxu0 %v244
    %410 = vmatprep.subr.mxu0 0.0
    %411 = vmatpush1.msra.mxu0 %v247
    %412 = vmatprep.subr.mxu0 0.0
    %413 = vmatpush1.msra.mxu0 %v250
    %414 = vmatprep.subr.mxu0 0.0
    %415 = vmatpush1.msra.mxu0 %v283
    %416 = vmatprep.subr.mxu0 0.0
    %417 = vmatpush1.msra.mxu0 0.0
    %418 = vmatprep.subr.mxu0 0.0
    %419 = vmatpush1.msra.mxu0 0.0
    %420 = vmatprep.mubr.f32.mxu0 %v273
    %421 = vmatmul.mubr.f32.gmra.mrb[0].mxu0 %v162
    %v422 = vpop.f32.mrb[0].mxu0
    %v423 = vadd.f32 %v267, %v422
    %v424 = vpop.f32.mrb[0].mxu0
    %425 = vdwg.mxu0
    %v426 = vmax.f32 %v352, 0.0
    %v427 = vmax.f32 %v354, 0.0
    %v428 = vmax.f32 %v423, 0.0
    %432 = vrot.lane.b32.xlu0 %v426, 118
    %v433 = vpop.permute.xlu0 %432
    %434 = vrot.lane.b32.xlu0 %v427, 118
    %v435 = vpop.permute.xlu0 %434
    %436 = vrot.lane.b32.xlu0 %v428, 118
    %v437 = vpop.permute.xlu0 %436
    %vm438 = vcmask 965632
    %v439 = vsel %vm438, %v433, %v435
    %v440 = vsel %vm438, %v435, %v437
    %v444 = vmax.f32 %v426, %v439
    %v445 = vmax.f32 %v427, %v440
    %v446 = vmax.f32 %v428, %v437
    %v447 = vld [vmem:[%s5] sm:$0xff]
    %v448 = vld [vmem:[%s5 + $0x8] sm:$0xff]
    %v449 = vld [vmem:[%s5 + $0x10] sm:$0xff]
    %v450 = vld [vmem:[%s5 + $0x18] sm:$0xff]
    %v451 = vld [vmem:[%s5 + $0x20] sm:$0xff]
    %v452 = vld [vmem:[%s5 + $0x28] sm:$0xff]
    %v453 = vld [vmem:[%s5 + $0x30] sm:$0xff]
    %v454 = vld [vmem:[%s5 + $0x38] sm:$0xff]
    %v455 = vld [vmem:[%s5 + $0x40] sm:$0xff]
    %v456 = vld [vmem:[%s5 + $0x48] sm:$0xff]
    %v457 = vld [vmem:[%s5 + $0x50] sm:$0xff]
    %v458 = vld [vmem:[%s5 + $0x58] sm:$0xff]
    %v459 = vld [vmem:[%s5 + $0x60] sm:$0xff]
    %v460 = vld [vmem:[%s5 + $0x68] sm:$0xff]
    %v461 = vld [vmem:[%s5 + $0x70] sm:$0xff]
    %v462 = vld [vmem:[%s5 + $0x78] sm:$0xff]
    %v463 = vld [vmem:[%s5 + $0x80] sm:$0xff]
    %v464 = vld [vmem:[%s5 + $0x88] sm:$0xff]
    %v465 = vld [vmem:[%s5 + $0x90] sm:$0xff]
    %v466 = vld [vmem:[%s5 + $0x98] sm:$0xff]
    %v467 = vld [vmem:[%s5 + $0xa0] sm:$0xff]
    %v468 = vld [vmem:[%s5 + $0xa8] sm:$0xff]
    %v469 = vld [vmem:[%s5 + $0xb0] sm:$0xff]
    %v470 = vld [vmem:[%s5 + $0xb8] sm:$0xff]
    %v471 = vld [vmem:[%s5 + $0xc0] sm:$0xff]
    %v472 = vld [vmem:[%s5 + $0xc8] sm:$0xff]
    %v473 = vld [vmem:[%s5 + $0xd0] sm:$0xff]
    %v474 = vld [vmem:[%s5 + $0xd8] sm:$0xff]
    %v475 = vld [vmem:[%s5 + $0xe0] sm:$0xff]
    %v476 = vld [vmem:[%s5 + $0xe8] sm:$0xff]
    %v477 = vld [vmem:[%s5 + $0xf0] sm:$0xff]
    %v478 = vld [vmem:[%s5 + $0xf8] sm:$0xff]
    %v479 = vld [vmem:[%s5 + $0x100] sm:$0xff]
    %v480 = vld [vmem:[%s5 + $0x108] sm:$0xff]
    %v481 = vld [vmem:[%s5 + $0x110] sm:$0xff]
    %v482 = vld [vmem:[%s5 + $0x118] sm:$0xff]
    %v483 = vld [vmem:[%s5 + $0x120] sm:$0x3]
    %v484 = vld [vmem:[%s6] sm:$0x1]
    %v486 = vlaneseq
    %v487 = vshrl.u32 %v486, 7
    %v488 = vsub.s32 0, %v487
    %v489 = vrot.slane %v484, %v488
    %vm491 = vcmask 277504
    %v493 = vsel %vm491, %v446, 0
    %vm495 = vcmask 1041408
    %v497 = vsel %vm495, %v483, 0
    %499 = vmatprep.subr.mxu0 0.0
    %500 = vmatpush1.msra.mxu0 %v447
    %501 = vmatprep.subr.mxu0 0.0
    %502 = vmatpush1.msra.mxu0 %v448
    %503 = vmatprep.subr.mxu0 0.0
    %504 = vmatpush1.msra.mxu0 %v449
    %505 = vmatprep.subr.mxu0 0.0
    %506 = vmatpush1.msra.mxu0 %v450
    %507 = vmatprep.subr.mxu0 0.0
    %508 = vmatpush1.msra.mxu0 %v451
    %509 = vmatprep.subr.mxu0 0.0
    %510 = vmatpush1.msra.mxu0 %v452
    %511 = vmatprep.subr.mxu0 0.0
    %512 = vmatpush1.msra.mxu0 %v453
    %513 = vmatprep.subr.mxu0 0.0
    %514 = vmatpush1.msra.mxu0 %v454
    %515 = vmatprep.subr.mxu0 0.0
    %516 = vmatpush1.msra.mxu0 %v455
    %517 = vmatprep.subr.mxu0 0.0
    %518 = vmatpush1.msra.mxu0 %v456
    %519 = vmatprep.subr.mxu0 0.0
    %520 = vmatpush1.msra.mxu0 %v457
    %521 = vmatprep.subr.mxu0 0.0
    %522 = vmatpush1.msra.mxu0 %v458
    %523 = vmatprep.subr.mxu0 0.0
    %524 = vmatpush1.msra.mxu0 %v459
    %525 = vmatprep.subr.mxu0 0.0
    %526 = vmatpush1.msra.mxu0 %v460
    %527 = vmatprep.subr.mxu0 0.0
    %528 = vmatpush1.msra.mxu0 %v461
    %529 = vmatprep.subr.mxu0 0.0
    %530 = vmatpush1.msra.mxu0 %v462
    %531 = vmatprep.subr.mxu0 0.0
    %532 = vmatpush1.msra.mxu0 %v463
    %533 = vmatprep.subr.mxu0 0.0
    %534 = vmatpush1.msra.mxu0 %v464
    %535 = vmatprep.subr.mxu0 0.0
    %536 = vmatpush1.msra.mxu0 %v465
    %537 = vmatprep.subr.mxu0 0.0
    %538 = vmatpush1.msra.mxu0 %v466
    %539 = vmatprep.subr.mxu0 0.0
    %540 = vmatpush1.msra.mxu0 %v467
    %541 = vmatprep.subr.mxu0 0.0
    %542 = vmatpush1.msra.mxu0 %v468
    %543 = vmatprep.subr.mxu0 0.0
    %544 = vmatpush1.msra.mxu0 %v469
    %545 = vmatprep.subr.mxu0 0.0
    %546 = vmatpush1.msra.mxu0 %v470
    %547 = vmatprep.subr.mxu0 0.0
    %548 = vmatpush1.msra.mxu0 %v471
    %549 = vmatprep.subr.mxu0 0.0
    %550 = vmatpush1.msra.mxu0 %v472
    %551 = vmatprep.subr.mxu0 0.0
    %552 = vmatpush1.msra.mxu0 %v473
    %553 = vmatprep.subr.mxu0 0.0
    %554 = vmatpush1.msra.mxu0 %v474
    %555 = vmatprep.subr.mxu0 0.0
    %556 = vmatpush1.msra.mxu0 %v475
    %557 = vmatprep.subr.mxu0 0.0
    %558 = vmatpush1.msra.mxu0 %v476
    %559 = vmatprep.subr.mxu0 0.0
    %560 = vmatpush1.msra.mxu0 %v477
    %561 = vmatprep.subr.mxu0 0.0
    %562 = vmatpush1.msra.mxu0 %v478
    %563 = vmatprep.mubr.f32.mxu0 %v445
    %564 = vmatmul.mubr.f32.gmra.mrb[0].mxu0 %v444
    %v565 = vpop.f32.mrb[0].mxu0
    %v566 = vadd.f32 %v489, %v565
    %v567 = vpop.f32.mrb[0].mxu0
    %568 = vdwg.mxu0
    %569 = vmatprep.subr.mxu0 0.0
    %570 = vmatpush1.msra.mxu0 %v479
    %571 = vmatprep.subr.mxu0 0.0
    %572 = vmatpush1.msra.mxu0 %v480
    %573 = vmatprep.subr.mxu0 0.0
    %574 = vmatpush1.msra.mxu0 %v481
    %575 = vmatprep.subr.mxu0 0.0
    %576 = vmatpush1.msra.mxu0 %v482
    %577 = vmatprep.subr.mxu0 0.0
    %578 = vmatpush1.msra.mxu0 %v497
    %579 = vmatprep.subr.mxu0 0.0
    %580 = vmatpush1.msra.mxu0 0.0
    %581 = vmatprep.subr.mxu0 0.0
    %582 = vmatpush1.msra.mxu0 0.0
    %583 = vmatprep.subr.mxu0 0.0
    %584 = vmatpush1.msra.mxu0 0.0
    %585 = vmatprep.subr.mxu0 0.0
    %586 = vmatpush1.msra.mxu0 0.0
    %587 = vmatprep.subr.mxu0 0.0
    %588 = vmatpush1.msra.mxu0 0.0
    %589 = vmatprep.subr.mxu0 0.0
    %590 = vmatpush1.msra.mxu0 0.0
    %591 = vmatprep.subr.mxu0 0.0
    %592 = vmatpush1.msra.mxu0 0.0
    %593 = vmatprep.subr.mxu0 0.0
    %594 = vmatpush1.msra.mxu0 0.0
    %595 = vmatprep.subr.mxu0 0.0
    %596 = vmatpush1.msra.mxu0 0.0
    %597 = vmatprep.subr.mxu0 0.0
    %598 = vmatpush1.msra.mxu0 0.0
    %599 = vmatprep.subr.mxu0 0.0
    %600 = vmatpush1.msra.mxu0 0.0
    %601 = vmatprep.subr.mxu0 0.0
    %602 = vmatpush1.msra.mxu0 0.0
    %603 = vmatprep.subr.mxu0 0.0
    %604 = vmatpush1.msra.mxu0 0.0
    %605 = vmatprep.subr.mxu0 0.0
    %606 = vmatpush1.msra.mxu0 0.0
    %607 = vmatprep.subr.mxu0 0.0
    %608 = vmatpush1.msra.mxu0 0.0
    %609 = vmatprep.subr.mxu0 0.0
    %610 = vmatpush1.msra.mxu0 0.0
    %611 = vmatprep.subr.mxu0 0.0
    %612 = vmatpush1.msra.mxu0 0.0
    %613 = vmatprep.subr.mxu0 0.0
    %614 = vmatpush1.msra.mxu0 0.0
    %615 = vmatprep.subr.mxu0 0.0
    %616 = vmatpush1.msra.mxu0 0.0
    %617 = vmatprep.subr.mxu0 0.0
    %618 = vmatpush1.msra.mxu0 0.0
    %619 = vmatprep.subr.mxu0 0.0
    %620 = vmatpush1.msra.mxu0 0.0
    %621 = vmatprep.subr.mxu0 0.0
    %622 = vmatpush1.msra.mxu0 0.0
    %623 = vmatprep.subr.mxu0 0.0
    %624 = vmatpush1.msra.mxu0 0.0
    %625 = vmatprep.subr.mxu0 0.0
    %626 = vmatpush1.msra.mxu0 0.0
    %627 = vmatprep.subr.mxu0 0.0
    %628 = vmatpush1.msra.mxu0 0.0
    %629 = vmatprep.subr.mxu0 0.0
    %630 = vmatpush1.msra.mxu0 0.0
    %631 = vmatprep.subr.mxu0 0.0
    %632 = vmatpush1.msra.mxu0 0.0
    %633 = vmatprep.mubr.f32.mxu0 0.0
    %634 = vmatmul.mubr.f32.gmra.mrb[0].mxu0 %v493
    %v635 = vpop.f32.mrb[0].mxu0
    %v636 = vadd.f32 %v566, %v635
    %v637 = vpop.f32.mrb[0].mxu0
    %638 = vdwg.mxu0
    %v639 = vmax.f32 %v636, 0.0
    %v640 = vld [vmem:[%s7] sm:$0xff]
    %v641 = vld [vmem:[%s7 + $0x8] sm:$0xff]
    %v642 = vld [vmem:[%s7 + $0x10] sm:$0xff]
    %v643 = vld [vmem:[%s7 + $0x18] sm:$0xff]
    %v644 = vld [vmem:[%s7 + $0x20] sm:$0xff]
    %v645 = vld [vmem:[%s7 + $0x28] sm:$0xff]
    %v646 = vld [vmem:[%s7 + $0x30] sm:$0xff]
    %v647 = vld [vmem:[%s7 + $0x38] sm:$0xff]
    %v648 = vld [vmem:[%s7 + $0x40] sm:$0xff]
    %v649 = vld [vmem:[%s7 + $0x48] sm:$0xff]
    %v650 = vld [vmem:[%s7 + $0x50] sm:$0xff]
    %v651 = vld [vmem:[%s7 + $0x58] sm:$0x3]
    %v652 = vld [vmem:[%s8] sm:$0x1]
    %v654 = vlaneseq
    %v655 = vshrl.u32 %v654, 7
    %v656 = vsub.s32 0, %v655
    %v657 = vrot.slane %v652, %v656
    %vm659 = vcmask 736256
    %v661 = vsel %vm659, %v639, 0
    %v664 = vsel %vm495, %v651, 0
    %666 = vmatprep.subr.mxu0 0.0
    %667 = vmatpush1.msra.mxu0 %v640
    %668 = vmatprep.subr.mxu0 0.0
    %669 = vmatpush1.msra.mxu0 %v641
    %670 = vmatprep.subr.mxu0 0.0
    %671 = vmatpush1.msra.mxu0 %v642
    %672 = vmatprep.subr.mxu0 0.0
    %673 = vmatpush1.msra.mxu0 %v643
    %674 = vmatprep.subr.mxu0 0.0
    %675 = vmatpush1.msra.mxu0 %v644
    %676 = vmatprep.subr.mxu0 0.0
    %677 = vmatpush1.msra.mxu0 %v645
    %678 = vmatprep.subr.mxu0 0.0
    %679 = vmatpush1.msra.mxu0 %v646
    %680 = vmatprep.subr.mxu0 0.0
    %681 = vmatpush1.msra.mxu0 %v647
    %682 = vmatprep.subr.mxu0 0.0
    %683 = vmatpush1.msra.mxu0 %v648
    %684 = vmatprep.subr.mxu0 0.0
    %685 = vmatpush1.msra.mxu0 %v649
    %686 = vmatprep.subr.mxu0 0.0
    %687 = vmatpush1.msra.mxu0 %v650
    %688 = vmatprep.subr.mxu0 0.0
    %689 = vmatpush1.msra.mxu0 %v664
    %690 = vmatprep.subr.mxu0 0.0
    %691 = vmatpush1.msra.mxu0 0.0
    %692 = vmatprep.subr.mxu0 0.0
    %693 = vmatpush1.msra.mxu0 0.0
    %694 = vmatprep.subr.mxu0 0.0
    %695 = vmatpush1.msra.mxu0 0.0
    %696 = vmatprep.subr.mxu0 0.0
    %697 = vmatpush1.msra.mxu0 0.0
    %698 = vmatprep.subr.mxu0 0.0
    %699 = vmatpush1.msra.mxu0 0.0
    %700 = vmatprep.subr.mxu0 0.0
    %701 = vmatpush1.msra.mxu0 0.0
    %702 = vmatprep.subr.mxu0 0.0
    %703 = vmatpush1.msra.mxu0 0.0
    %704 = vmatprep.subr.mxu0 0.0
    %705 = vmatpush1.msra.mxu0 0.0
    %706 = vmatprep.subr.mxu0 0.0
    %707 = vmatpush1.msra.mxu0 0.0
    %708 = vmatprep.subr.mxu0 0.0
    %709 = vmatpush1.msra.mxu0 0.0
    %710 = vmatprep.subr.mxu0 0.0
    %711 = vmatpush1.msra.mxu0 0.0
    %712 = vmatprep.subr.mxu0 0.0
    %713 = vmatpush1.msra.mxu0 0.0
    %714 = vmatprep.subr.mxu0 0.0
    %715 = vmatpush1.msra.mxu0 0.0
    %716 = vmatprep.subr.mxu0 0.0
    %717 = vmatpush1.msra.mxu0 0.0
    %718 = vmatprep.subr.mxu0 0.0
    %719 = vmatpush1.msra.mxu0 0.0
    %720 = vmatprep.subr.mxu0 0.0
    %721 = vmatpush1.msra.mxu0 0.0
    %722 = vmatprep.subr.mxu0 0.0
    %723 = vmatpush1.msra.mxu0 0.0
    %724 = vmatprep.subr.mxu0 0.0
    %725 = vmatpush1.msra.mxu0 0.0
    %726 = vmatprep.subr.mxu0 0.0
    %727 = vmatpush1.msra.mxu0 0.0
    %728 = vmatprep.subr.mxu0 0.0
    %729 = vmatpush1.msra.mxu0 0.0
    %730 = vmatprep.mubr.f32.mxu0 0.0
    %731 = vmatmul.mubr.f32.gmra.mrb[0].mxu0 %v661
    %v732 = vpop.f32.mrb[0].mxu0
    %v733 = vadd.f32 %v657, %v732
    %v734 = vpop.f32.mrb[0].mxu0
    %735 = vdwg.mxu0
    %v736 = vmax.f32 %v733, 0.0
    %v737 = vld [vmem:[%s9] sm:$0xff]
    %v738 = vld [vmem:[%s9 + $0x8] sm:$0xff]
    %v739 = vld [vmem:[%s9 + $0x10] sm:$0xff]
    %v740 = vld [vmem:[%s9 + $0x18] sm:$0xff]
    %v741 = vld [vmem:[%s9 + $0x20] sm:$0xff]
    %v742 = vld [vmem:[%s9 + $0x28] sm:$0xff]
    %v743 = vld [vmem:[%s9 + $0x30] sm:$0xff]
    %v744 = vld [vmem:[%s9 + $0x38] sm:$0xff]
    %v745 = vld [vmem:[%s9 + $0x40] sm:$0xff]
    %v746 = vld [vmem:[%s9 + $0x48] sm:$0xff]
    %v747 = vld [vmem:[%s9 + $0x50] sm:$0xff]
    %v748 = vld [vmem:[%s9 + $0x58] sm:$0x3]
    %v749 = vld [vmem:[%s10] sm:$0x1]
    %v751 = vlaneseq
    %v752 = vshrl.u32 %v751, 7
    %v753 = vsub.s32 0, %v752
    %v754 = vrot.slane %v749, %v753
    %v757 = vsel %vm659, %v736, 0
    %v760 = vsel %vm495, %v748, 0
    %762 = vmatprep.subr.mxu0 0.0
    %763 = vmatpush1.msra.mxu0 %v737
    %764 = vmatprep.subr.mxu0 0.0
    %765 = vmatpush1.msra.mxu0 %v738
    %766 = vmatprep.subr.mxu0 0.0
    %767 = vmatpush1.msra.mxu0 %v739
    %768 = vmatprep.subr.mxu0 0.0
    %769 = vmatpush1.msra.mxu0 %v740
    %770 = vmatprep.subr.mxu0 0.0
    %771 = vmatpush1.msra.mxu0 %v741
    %772 = vmatprep.subr.mxu0 0.0
    %773 = vmatpush1.msra.mxu0 %v742
    %774 = vmatprep.subr.mxu0 0.0
    %775 = vmatpush1.msra.mxu0 %v743
    %776 = vmatprep.subr.mxu0 0.0
    %777 = vmatpush1.msra.mxu0 %v744
    %778 = vmatprep.subr.mxu0 0.0
    %779 = vmatpush1.msra.mxu0 %v745
    %780 = vmatprep.subr.mxu0 0.0
    %781 = vmatpush1.msra.mxu0 %v746
    %782 = vmatprep.subr.mxu0 0.0
    %783 = vmatpush1.msra.mxu0 %v747
    %784 = vmatprep.subr.mxu0 0.0
    %785 = vmatpush1.msra.mxu0 %v760
    %786 = vmatprep.subr.mxu0 0.0
    %787 = vmatpush1.msra.mxu0 0.0
    %788 = vmatprep.subr.mxu0 0.0
    %789 = vmatpush1.msra.mxu0 0.0
    %790 = vmatprep.subr.mxu0 0.0
    %791 = vmatpush1.msra.mxu0 0.0
    %792 = vmatprep.subr.mxu0 0.0
    %793 = vmatpush1.msra.mxu0 0.0
    %794 = vmatprep.subr.mxu0 0.0
    %795 = vmatpush1.msra.mxu0 0.0
    %796 = vmatprep.subr.mxu0 0.0
    %797 = vmatpush1.msra.mxu0 0.0
    %798 = vmatprep.subr.mxu0 0.0
    %799 = vmatpush1.msra.mxu0 0.0
    %800 = vmatprep.subr.mxu0 0.0
    %801 = vmatpush1.msra.mxu0 0.0
    %802 = vmatprep.subr.mxu0 0.0
    %803 = vmatpush1.msra.mxu0 0.0
    %804 = vmatprep.subr.mxu0 0.0
    %805 = vmatpush1.msra.mxu0 0.0
    %806 = vmatprep.subr.mxu0 0.0
    %807 = vmatpush1.msra.mxu0 0.0
    %808 = vmatprep.subr.mxu0 0.0
    %809 = vmatpush1.msra.mxu0 0.0
    %810 = vmatprep.subr.mxu0 0.0
    %811 = vmatpush1.msra.mxu0 0.0
    %812 = vmatprep.subr.mxu0 0.0
    %813 = vmatpush1.msra.mxu0 0.0
    %814 = vmatprep.subr.mxu0 0.0
    %815 = vmatpush1.msra.mxu0 0.0
    %816 = vmatprep.subr.mxu0 0.0
    %817 = vmatpush1.msra.mxu0 0.0
    %818 = vmatprep.subr.mxu0 0.0
    %819 = vmatpush1.msra.mxu0 0.0
    %820 = vmatprep.subr.mxu0 0.0
    %821 = vmatpush1.msra.mxu0 0.0
    %822 = vmatprep.subr.mxu0 0.0
    %823 = vmatpush1.msra.mxu0 0.0
    %824 = vmatprep.subr.mxu0 0.0
    %825 = vmatpush1.msra.mxu0 0.0
    %826 = vmatprep.mubr.f32.mxu0 0.0
    %827 = vmatmul.mubr.f32.gmra.mrb[0].mxu0 %v757
    %v828 = vpop.f32.mrb[0].mxu0
    %v829 = vadd.f32 %v754, %v828
    %v830 = vpop.f32.mrb[0].mxu0
    %831 = vdwg.mxu0
    %vm832 = vcmask 33792
    %v833 = vsel %vm832, %v829, -inf
    %834 = vmax.xlane.f32.xlu0 %v833
    %v835 = vpop.xlane.xlu0 %834
    %v836 = vsub.f32 %v829, %v835
    %v837 = vmul.f32 %v836, 1.442695
    %v838 = vpow.pop %v837
    %v839 = vsel %vm832, %v838, 0.0
    %840 = vadd.xlane.f32.xlu0 %v839
    %v841 = vpop.xlane.xlu0 %840
    %v842 = vlog2.pop %v841
    %v843 = vmul.f32 %v842, 0.6931472
    %v844 = vadd.f32 %v835, %v843
    %v845 = vsub.f32 %v829, %v844
    %846 = vst.msk [vmem:[#allocation2] sm:$0x3] %vm832, %v845
    // Predicated region
    $region46: #{tpu_custom_call.1} parent=1 // pred_check
      _
    $region47: #{tpu_custom_call.1} parent=1 // pred_check_branch
      %848 = sbr.rel (0) target = $region49
    $region48: #{tpu_custom_call.1} parent=1 // pred_region
      %s850 = ssub.s32 32, 32
      %851 = vsyncadd [#allocation3], %s850
      %s853 = sshll.u32 [#allocation2], 4
      %s854 = int_to_ptr.vmem [resolvable:$true] %s853
      %856 = dma.vmem_to_hbm [thread:$0]  %s854, 32, %s11, [#allocation3]
    $region49: #{tpu_custom_call.1} parent=1 // pred_fallthru
      _
    // Predicated region
    $region50: #{tpu_custom_call.1} parent=1 // pred_check
      _
    $region51: #{tpu_custom_call.1} parent=1 // pred_check_branch
      %858 = sbr.rel (0) target = $region53
    $region52: #{tpu_custom_call.1} parent=1 // pred_region
      %859 = dma.done [#allocation3], 32
    $region53: #{tpu_custom_call.1} parent=1 // pred_fallthru
      _
    %860 = vsyncpa [#allocation3], 1

</llo_original>
